<compile_context>
chip_gen: v7x
topology: tpu7x:2x2x1
jax: 0.10.0
libtpu: 0.0.40
codegen_flags: <defaults>
</compile_context>

<pallas_src>
import functools

import jax
import jax.numpy as jnp
from jax import lax
from jax.experimental import pallas as pl
from jax.experimental.pallas import tpu as pltpu


_NEG_LARGE = -1.0e30  # finite "-inf" for padded vocab columns (avoids inf-inf)


def _round_up(x, m):
    return ((x + m - 1) // m) * m


def _vmem_budget_bytes():
    """Generation-aware VMEM limit: ~3/4 of physical, capped at 100 MiB.

    v5e/v6e (128 MiB phys) -> 96 MiB, v7x (64 MiB phys) -> 48 MiB.
    Falls back to a conservative 48 MiB if the query is unavailable.
    """
    default = 48 * 1024 * 1024
    try:
        cap = int(pltpu.get_tpu_info().vmem_capacity_bytes)
        if cap <= 0:
            return default
        return min((cap * 3) // 4, 100 * 1024 * 1024)
    except Exception:
        return default


# ----------------------------------------------------------------------------
# Pallas kernel 1: synthetic backbone dense layer  hidden = tanh(x @ W + b)
# Row- (and optionally dout-) tiled, parallel grid, bf16 operands + bf16 out,
# f32 accumulation on the MXU.
# ----------------------------------------------------------------------------
def _dense_tanh_kernel(x_ref, w_ref, b_ref, o_ref):
    h = jnp.dot(x_ref[...], w_ref[...], preferred_element_type=jnp.float32)
    o_ref[...] = jnp.tanh(h + b_ref[...]).astype(o_ref.dtype)


def _pick_dout_tile(d, dout, budget_bytes=8 * 1024 * 1024):
    """Tile the output dim only when the resident bf16 weight block is big."""
    if d * dout * 2 <= budget_bytes or dout % 256 != 0:
        return dout
    tdo = max(256, ((budget_bytes // (d * 2)) // 256) * 256)
    while dout % tdo != 0:
        tdo -= 256
    return max(256, tdo)


def dense_tanh(x, w, b, *, max_row_tile=512):
    n, d = x.shape
    dout = w.shape[1]
    tm = min(max_row_tile, _round_up(n, 8))
    n_pad = _round_up(n, tm)
    tdo = _pick_dout_tile(d, dout)

    x_p = jnp.pad(x, ((0, n_pad - n), (0, 0))).astype(jnp.bfloat16)
    w_bf = w.astype(jnp.bfloat16)
    b2 = b.reshape(1, dout).astype(jnp.float32)

    out = pl.pallas_call(
        _dense_tanh_kernel,
        out_shape=jax.ShapeDtypeStruct((n_pad, dout), jnp.bfloat16),  # bf16 out
        grid=(n_pad // tm, dout // tdo),
        in_specs=[
            pl.BlockSpec((tm, d), lambda i, j: (i, 0)),      # row tile of x
            pl.BlockSpec((d, tdo), lambda i, j: (0, j)),     # weight column tile
            pl.BlockSpec((1, tdo), lambda i, j: (0, j)),     # bias column tile
        ],
        out_specs=pl.BlockSpec((tm, tdo), lambda i, j: (i, j)),
        compiler_params=pltpu.CompilerParams(
            dimension_semantics=("parallel", "parallel"),
            vmem_limit_bytes=_vmem_budget_bytes(),
        ),
    )(x_p, w_bf, b2)
    return out[:n]


# ----------------------------------------------------------------------------
# Pallas kernel 2: multihead dist-head NLL (positivity_func='exp' ==
# per-head softmax cross-entropy, summed over the horizon).
#
# Grid = (N_tiles [parallel, leading], flat (H*V_pad) column tiles
#         [arbitrary, innermost reduction]).
# Streaming log-sum-exp across a head's column tiles (running max m, rescaled
# sum s in (tn,1) VMEM scratch); the target-logit and per-head LSE terms are
# accumulated directly into the resident (tn,1) f32 output block, which is
# stored to HBM once per row tile.  Weights stream (N_pad/tn) times total; with
# tn up to 1024 the kernel is MXU-bound on all of v5e/v6e/v7x.
# ----------------------------------------------------------------------------
def _multihead_nll_kernel(z_ref, w_ref, b_ref, y_ref, nll_ref, m_sc, s_sc,
                          *, tiles_per_head):
    ci = pl.program_id(1)                     # flat column-tile index (innermost)
    tn = z_ref.shape[0]
    tv = w_ref.shape[1]
    vi = ci % tiles_per_head                  # tile index within the current head

    @pl.when(ci == 0)
    def _init_row_tile():
        nll_ref[...] = jnp.zeros_like(nll_ref)

    @pl.when(vi == 0)
    def _init_head():
        m_sc[...] = jnp.full_like(m_sc, -jnp.inf)
        s_sc[...] = jnp.zeros_like(s_sc)

    # bf16 operands, f32 accumulation on the MXU; (tn, tv) logits tile.
    logits = jnp.dot(z_ref[...], w_ref[...], preferred_element_type=jnp.float32)
    logits = logits + b_ref[...]              # f32 bias; -1e30 on padded columns

    # streaming (online-softmax) log-sum-exp over this head's column tiles
    m_prev = m_sc[...]
    m_new = jnp.maximum(m_prev, jnp.max(logits, axis=-1, keepdims=True))
    alpha = jnp.exp(m_prev - m_new)
    s_sc[...] = alpha * s_sc[...] + jnp.sum(jnp.exp(logits - m_new),
                                            axis=-1, keepdims=True)
    m_sc[...] = m_new

    # target logit: targets are pre-flattened to h*V_pad + y and land in exactly
    # one column tile; subtract straight into the resident output accumulator.
    tgt = y_ref[0]                                                # (tn, 1) int32
    col = lax.broadcasted_iota(jnp.int32, (tn, tv), 1) + ci * tv
    nll_ref[...] -= jnp.sum(jnp.where(col == tgt, logits, 0.0),
                            axis=-1, keepdims=True)

    @pl.when(vi == tiles_per_head - 1)
    def _finish_head():
        nll_ref[...] += m_sc[...] + jnp.log(s_sc[...])


def _pick_nll_tiles(n, d, v, budget, *, max_tn=1024, max_tv=2048):
    """256-aligned row / column tiles sized to the generation's VMEM budget."""
    tn = max(256, min(max_tn, _round_up(n, 256)))
    tv = max(256, min(max_tv, _round_up(v, 256)))

    def est(tn_, tv_):
        return (2 * tn_ * d * 2          # z block, double-buffered bf16
                + 2 * d * tv_ * 2        # weight block, double-buffered bf16
                + 2 * tv_ * 4            # bias block
                + 6 * tn_ * 4            # y block + out block + m/s scratch
                + 4 * tn_ * tv_ * 4)     # logits/exp/iota/mask temporaries f32

    while est(tn, tv) > 0.9 * budget and tv > 256:
        tv = max(256, ((tv // 2) // 256) * 256)
    while est(tn, tv) > 0.9 * budget and tn > 256:
        tn = max(256, ((tn // 2) // 256) * 256)

    v_pad = _round_up(v, tv)
    n_pad = _round_up(n, tn)
    return tn, tv, n_pad, v_pad


def multihead_nll(z, w_head, b_head, y):
    """z: (N, D), w_head: (H, D, V) f32, b_head: (H, V) f32, y: (N, H) int.

    Returns per-sample NLL of shape (N, 1):  sum_h CE(z @ W_h + b_h, y[:, h]).
    """
    n, d = z.shape
    H, _, v = w_head.shape

    budget = _vmem_budget_bytes()
    tn, tv, n_pad, v_pad = _pick_nll_tiles(n, d, v, budget)
    hv = H * v_pad
    tiles_per_head = v_pad // tv

    # ----- wrapper-side layout (would be hoisted out of the step in training) -
    z_p = jnp.pad(z, ((0, n_pad - n), (0, 0))).astype(jnp.bfloat16)

    # (H, D, V) -> pad vocab -> (D, H*V_pad) bf16; column index = h*V_pad + vv.
    w_p = jnp.pad(w_head, ((0, 0), (0, 0), (0, v_pad - v)))
    w2 = jnp.transpose(w_p, (1, 0, 2)).reshape(d, hv).astype(jnp.bfloat16)

    # bias: f32, -1e30 on padded vocab columns so they never win the softmax.
    b_p = jnp.pad(b_head.astype(jnp.float32), ((0, 0), (0, v_pad - v)),
                  constant_values=_NEG_LARGE)
    b2 = b_p.reshape(1, hv)

    # targets flattened into the (H*V_pad) column space: h*V_pad + y[:, h].
    # NOTE: out-of-range labels silently contribute a 0 target logit (no error).
    y_p = jnp.pad(y.astype(jnp.int32), ((0, n_pad - n), (0, 0)))      # (N_pad, H)
    yf = y_p + (jnp.arange(H, dtype=jnp.int32) * v_pad)[None, :]
    y3 = jnp.transpose(yf)[:, :, None]                                # (H, N_pad, 1)

    kernel = functools.partial(_multihead_nll_kernel,
                               tiles_per_head=tiles_per_head)

    nll = pl.pallas_call(
        kernel,
        out_shape=jax.ShapeDtypeStruct((n_pad, 1), jnp.float32),
        grid=(n_pad // tn, hv // tv),
        in_specs=[
            pl.BlockSpec((tn, d), lambda ni, ci: (ni, 0)),            # z: once/tile
            pl.BlockSpec((d, tv), lambda ni, ci: (0, ci)),            # weight tile
            pl.BlockSpec((1, tv), lambda ni, ci: (0, ci)),            # bias tile
            pl.BlockSpec((1, tn, 1),                                  # flat targets
                         lambda ni, ci: (ci // tiles_per_head, ni, 0)),
        ],
        out_specs=pl.BlockSpec((tn, 1), lambda ni, ci: (ni, 0)),      # resident acc
        scratch_shapes=[pltpu.VMEM((tn, 1), jnp.float32)] * 2,        # m, s
        compiler_params=pltpu.CompilerParams(
            dimension_semantics=("parallel", "arbitrary"),
            vmem_limit_bytes=budget,
        ),
    )(z_p, w2, b2, y3)
    # padded rows hold garbage NLL; they are sliced off before the mean.
    return nll[:n]


# ----------------------------------------------------------------------------
# Parameter init (deterministic, synthetic — no checkpoint load)
# ----------------------------------------------------------------------------
def init_params(key, vocab_size, embed_dim, horizon):
    k_emb, k_bb, k_head = jax.random.split(key, 3)
    return {
        "emb": 0.02 * jax.random.normal(k_emb, (vocab_size, embed_dim), jnp.float32),
        "w_bb": 0.05 * jax.random.normal(k_bb, (embed_dim, embed_dim), jnp.float32),
        "b_bb": jnp.zeros((embed_dim,), jnp.float32),
        "w_head": 0.05 * jax.random.normal(k_head, (horizon, embed_dim, vocab_size),
                                           jnp.float32),
        "b_head": jnp.zeros((horizon, vocab_size), jnp.float32),
    }


# ----------------------------------------------------------------------------
# TJDSimple.forward (labels provided, use_memory_efficient_loss=True)
# ----------------------------------------------------------------------------
def tjd_simple_forward(params, input_ids, horizon, shift):
    B, T_full = input_ids.shape
    H = horizon
    T = (T_full // H) * H                     # truncate to a multiple of the horizon
    input_ids = input_ids[:, :T]
    D = params["emb"].shape[1]

    # --- memory-efficient subsample applied BEFORE the backbone stand-in ---
    # Only valid because the synthetic backbone is per-position pointwise; a real
    # causal transformer backbone would need all positions.
    positions = jnp.arange(shift, T - H, H)                 # (P,)  kept rows
    P = positions.shape[0]

    # --- backbone ---
    # TODO(synk): HF transformer backbone + LoRA adapters have no Pallas equivalent;
    # replaced by a deterministic embedding lookup + one Pallas dense+tanh layer.
    ids_sub = input_ids[:, positions]                       # (B, P)      glue: gather
    emb = params["emb"][ids_sub]                            # (B, P, D)   glue: embedding
    z = dense_tanh(emb.reshape(B * P, D), params["w_bb"], params["b_bb"])  # (B*P, D) bf16

    # --- windowed targets: y[b, t, h] = input_ids[b, t + 1 + h] for kept t ---
    tgt_idx = positions[:, None] + 1 + jnp.arange(H)[None, :]   # (P, H)
    y = input_ids[:, tgt_idx].reshape(B * P, H)

    assert z.shape[0] == y.shape[0]

    # --- dist head NLL (Pallas) + mean over samples (sum over the H heads per
    #     sample, matching dist_head(z, y).mean() in the reference) ---
    # NOTE: bf16 matmul operands (f32 accumulation / LSE) => loss matches the f32
    # reference to ~1e-2 relative, not bit-for-bit.
    nll = multihead_nll(z, params["w_head"], params["b_head"], y)      # (N, 1)
    loss = jnp.mean(nll)
    return loss


if __name__ == "__main__":
    key = jax.random.PRNGKey(0)
    k_param, k_data, k_shift = jax.random.split(key, 3)

    B, T, H = 2, 24, 3          # batch, sequence length, horizon
    V, D = 128, 32              # vocab size, embedding dim

    params = init_params(k_param, V, D, H)
    input_ids = jax.random.randint(k_data, (B, T), 0, V, dtype=jnp.int32)

    # deterministic stand-in for torch.randint(0, H, (1,)).item()
    shift = int(jax.random.randint(k_shift, (), 0, H))

    loss = tjd_simple_forward(params, input_ids, H, shift)
    loss = jax.block_until_ready(loss)
    assert loss.shape == () and bool(jnp.isfinite(loss))
    print("KERNEL_OK")
</pallas_src>

<mosaic_0001>
module attributes {stable_mosaic.version = 11 : i64} {
  func.func @_dense_tanh_kernel(%arg0: i32, %arg1: i32, %arg2: memref<16x32xbf16, #tpu.memory_space<vmem>>, %arg3: memref<32x32xbf16, #tpu.memory_space<vmem>>, %arg4: memref<1x32xf32, #tpu.memory_space<vmem>>, %arg5: memref<16x32xbf16, #tpu.memory_space<vmem>>) attributes {dimension_semantics = [#tpu.dimension_semantics<parallel>, #tpu.dimension_semantics<parallel>], iteration_bounds = array<i64: 1, 1>, scalar_prefetch = 0 : i64, scratch_operands = 0 : i64, tpu.core_type = #tpu.core_type<tc>, window_params = [{transform_indices = @transform_0, window_bounds = array<i64: 16, 32>}, {transform_indices = @transform_1, window_bounds = array<i64: 32, 32>}, {transform_indices = @transform_2, window_bounds = array<i64: 1, 32>}, {transform_indices = @transform_3, window_bounds = array<i64: 16, 32>}]} {
    %c0 = arith.constant 0 : index
    %c0_0 = arith.constant 0 : index
    %0 = vector.load %arg2[%c0, %c0_0] : memref<16x32xbf16, #tpu.memory_space<vmem>>, vector<16x32xbf16>
    %c0_1 = arith.constant 0 : index
    %c0_2 = arith.constant 0 : index
    %1 = vector.load %arg3[%c0_1, %c0_2] : memref<32x32xbf16, #tpu.memory_space<vmem>>, vector<32x32xbf16>
    %cst = arith.constant dense<0.000000e+00> : vector<16x32xf32>
    %2 = tpu.matmul %0, %1, %cst {dimension_numbers = #tpu.dot_dimension_numbers<[1], [0], [0], [1], [0, 0, 1, 1], [], []>} : vector<16x32xbf16>, vector<32x32xbf16>, vector<16x32xf32> -> vector<16x32xf32>
    %c0_3 = arith.constant 0 : index
    %c0_4 = arith.constant 0 : index
    %3 = vector.load %arg4[%c0_3, %c0_4] : memref<1x32xf32, #tpu.memory_space<vmem>>, vector<1x32xf32>
    %4 = vector.broadcast %3 : vector<1x32xf32> to vector<16x32xf32>
    %5 = arith.addf %2, %4 : vector<16x32xf32>
    %6 = math.tanh %5 : vector<16x32xf32>
    %7 = arith.truncf %6 : vector<16x32xf32> to vector<16x32xbf16>
    %c0_5 = arith.constant 0 : index
    %c0_6 = arith.constant 0 : index
    %8 = vector.load %arg5[%c0_5, %c0_6] : memref<16x32xbf16, #tpu.memory_space<vmem>>, vector<16x32xbf16>
    tpu.vector_store %arg5[%c0_5, %c0_6], %7 {strides = array<i32>} : memref<16x32xbf16, #tpu.memory_space<vmem>>, vector<16x32xbf16>,
    return
  }
  func.func @transform_0(%arg0: i32, %arg1: i32) -> (i32, i32) {
    %c0_i32 = arith.constant 0 : i32
    %c0_i32_0 = arith.constant 0 : i32
    return %arg0, %c0_i32 : i32, i32
  }
  func.func @transform_1(%arg0: i32, %arg1: i32) -> (i32, i32) {
    %c0_i32 = arith.constant 0 : i32
    %c0_i32_0 = arith.constant 0 : i32
    return %c0_i32, %arg1 : i32, i32
  }
  func.func @transform_2(%arg0: i32, %arg1: i32) -> (i32, i32) {
    %c0_i32 = arith.constant 0 : i32
    %c0_i32_0 = arith.constant 0 : i32
    return %c0_i32, %arg1 : i32, i32
  }
  func.func @transform_3(%arg0: i32, %arg1: i32) -> (i32, i32) {
    %c0_i32 = arith.constant 0 : i32
    return %arg0, %arg1 : i32, i32
  }
}

</mosaic_0001>

<llo_original>
// kernel: tpu_custom_call.1
$region0: #{tpu_custom_call.1}
  #allocation0 [shape = 'u32[]', space=smem, size = 0x4, offset = 0x4, fixed_abs, tag = 'smem constant byte address 0x4 - core index']
  #allocation1 [shape = 'u32[144,128]{1,0:T(1,128)}', space=vmem, size = 0x12000, scoped, tag = 'internal scratch']
  %s0 = inlined_call_operand.hbm [shape: bf16[16,32], index: 0, kind: input, shape index: {}]
  %s1 = inlined_call_operand.hbm [shape: bf16[32,32], index: 1, kind: input, shape index: {}]
  %s2 = inlined_call_operand.vmem [shape: f32[1,32], index: 2, kind: input, shape index: {}]
  %s3 = inlined_call_operand.hbm [shape: bf16[16,32], index: 3, kind: output, shape index: {}]
  %s4 = sld [smem:[#allocation0]]
  $region30: #{tpu_custom_call.1} parent=0
    _
  %s6 = ssub.s32 1, %s4
  %s7 = scalar_select 0, %s6, %s4
  $region1: #{tpu_custom_call.1} parent=0
    #allocation2 [shape = 'u8[4096]{0}', space=vmem, size = 0x1000, scoped, tag = 'input window, operand 0, single buffered']
    #allocation3 [shape = 's32[1]{0}', space=sflag, size = 0x4, scoped, tag = 'scoped memory for tpu_custom_call.1']
    #allocation4 [shape = 's32[1]{0}', space=sflag, size = 0x4, scoped, tag = 'scoped memory for tpu_custom_call.1']
    #allocation5 [shape = 'u8[8192]{0}', space=vmem, size = 0x2000, scoped, tag = 'input window, operand 1, single buffered']
    #allocation6 [shape = 's32[1]{0}', space=sflag, size = 0x4, scoped, tag = 'scoped memory for tpu_custom_call.1']
    #allocation7 [shape = 'u8[4096]{0}', space=vmem, size = 0x1000, scoped, tag = 'output window, operand 0, single buffered']
    %8 = vsyncpa [#allocation3], 0
    %9 = vsyncpa [#allocation6], 0
    %10 = vsyncpa [#allocation4], 0
    // Predicated region
    $region2: #{tpu_custom_call.1} parent=1 // pred_check
      _
    $region3: #{tpu_custom_call.1} parent=1 // pred_check_branch
      %12 = sbr.rel (0) target = $region5
    $region4: #{tpu_custom_call.1} parent=1 // pred_region
      %s14 = ssub.s32 128, 128
      %15 = vsyncadd [#allocation3], %s14
      %s16 = sshll.u32 [#allocation2], 4
      %s17 = int_to_ptr.vmem [resolvable:$true] %s16
      %22 = dma.hbm_to_vmem [thread:$0]  %s0, 128, %s17, [#allocation3], 64, 64, 4
    $region5: #{tpu_custom_call.1} parent=1 // pred_fallthru
      _
    // Predicated region
    $region6: #{tpu_custom_call.1} parent=1 // pred_check
      _
    $region7: #{tpu_custom_call.1} parent=1 // pred_check_branch
      %24 = sbr.rel (0) target = $region9
    $region8: #{tpu_custom_call.1} parent=1 // pred_region
      %s26 = ssub.s32 256, 256
      %27 = vsyncadd [#allocation6], %s26
      %s28 = sshll.u32 [#allocation5], 4
      %s29 = int_to_ptr.vmem [resolvable:$true] %s28
      %34 = dma.hbm_to_vmem [thread:$0]  %s1, 256, %s29, [#allocation6], 64, 64, 4
    $region9: #{tpu_custom_call.1} parent=1 // pred_fallthru
      _
    // Predicated region
    $region10: #{tpu_custom_call.1} parent=1 // pred_check
      _
    $region11: #{tpu_custom_call.1} parent=1 // pred_check_branch
      %36 = sbr.rel (0) target = $region13
    $region12: #{tpu_custom_call.1} parent=1 // pred_region
      _
    $region13: #{tpu_custom_call.1} parent=1 // pred_fallthru
      _
    // Predicated region
    $region14: #{tpu_custom_call.1} parent=1 // pred_check
      _
    $region15: #{tpu_custom_call.1} parent=1 // pred_check_branch
      %38 = sbr.rel (0) target = $region17
    $region16: #{tpu_custom_call.1} parent=1 // pred_region
      %39 = dma.done [#allocation3], 128
    $region17: #{tpu_custom_call.1} parent=1 // pred_fallthru
      _
    // Predicated region
    $region18: #{tpu_custom_call.1} parent=1 // pred_check
      _
    $region19: #{tpu_custom_call.1} parent=1 // pred_check_branch
      %41 = sbr.rel (0) target = $region21
    $region20: #{tpu_custom_call.1} parent=1 // pred_region
      %42 = dma.done [#allocation6], 256
    $region21: #{tpu_custom_call.1} parent=1 // pred_fallthru
      _
    %v44 = vld [vmem:[#allocation2] sm:$0xf]
    %v45 = vld [vmem:[#allocation2 + $0x4] sm:$0xf]
    %v46 = vld [vmem:[#allocation5] sm:$0xf]
    %v47 = vld [vmem:[#allocation5 + $0x4] sm:$0xf]
    %v48 = vld [vmem:[#allocation5 + $0x8] sm:$0xf]
    %v49 = vld [vmem:[#allocation5 + $0xc] sm:$0xf]
    %v50 = vld [vmem:[%s2] sm:$0x1]
    %v52 = vlaneseq
    %v53 = vshrl.u32 %v52, 7
    %v54 = vsub.s32 0, %v53
    %v55 = vrot.slane %v50, %v54
    %v59 = vunpack.c.l.b16 %v44
    %v60 = vunpack.c.l.b16 %v45
    %v61 = vpack.c.b16 %v60, %v59
    %v66 = vunpack.c.l.b16 %v46
    %v67 = vunpack.c.l.b16 %v47
    %v68 = vunpack.c.l.b16 %v48
    %v69 = vunpack.c.l.b16 %v49
    %v70 = vpack.c.b16 %v67, %v66
    %v71 = vpack.c.b16 %v69, %v68
    %vm74 = vcmask 261120
    %v76 = vsel %vm74, %v61, 0
    %78 = vmatprep.subr.bf16.mxu0 0
    %79 = vmatpush1.bf16.msra.mxu0 %v70
    %80 = vmatprep.subr.bf16.mxu0 0
    %81 = vmatpush1.bf16.msra.mxu0 %v71
    %82 = vmatprep.subr.bf16.mxu0 0
    %83 = vmatpush1.bf16.msra.mxu0 0
    %84 = vmatprep.subr.bf16.mxu0 0
    %85 = vmatpush1.bf16.msra.mxu0 0
    %86 = vmatprep.subr.bf16.mxu0 0
    %87 = vmatpush1.bf16.msra.mxu0 0
    %88 = vmatprep.subr.bf16.mxu0 0
    %89 = vmatpush1.bf16.msra.mxu0 0
    %90 = vmatprep.subr.bf16.mxu0 0
    %91 = vmatpush1.bf16.msra.mxu0 0
    %92 = vmatprep.subr.bf16.mxu0 0
    %93 = vmatpush1.bf16.msra.mxu0 0
    %94 = vmatprep.subr.bf16.mxu0 0
    %95 = vmatpush1.bf16.msra.mxu0 0
    %96 = vmatprep.subr.bf16.mxu0 0
    %97 = vmatpush1.bf16.msra.mxu0 0
    %98 = vmatprep.subr.bf16.mxu0 0
    %99 = vmatpush1.bf16.msra.mxu0 0
    %100 = vmatprep.subr.bf16.mxu0 0
    %101 = vmatpush1.bf16.msra.mxu0 0
    %102 = vmatprep.subr.bf16.mxu0 0
    %103 = vmatpush1.bf16.msra.mxu0 0
    %104 = vmatprep.subr.bf16.mxu0 0
    %105 = vmatpush1.bf16.msra.mxu0 0
    %106 = vmatprep.subr.bf16.mxu0 0
    %107 = vmatpush1.bf16.msra.mxu0 0
    %108 = vmatprep.subr.bf16.mxu0 0
    %109 = vmatpush1.bf16.msra.mxu0 0
    %110 = vmatprep.mubr.bf16.mxu0 0
    %111 = vmatmul.mubr.bf16.gmra.mrb[0].mxu0 %v76
    %v112 = vpop.f32.mrb[0].mxu0
    %v113 = vadd.f32 %v55, %v112
    %v114 = vpop.f32.mrb[0].mxu0
    %v115 = vpop.f32.mrb[0].mxu0
    %v116 = vadd.f32 %v55, %v115
    %v117 = vpop.f32.mrb[0].mxu0
    %118 = vdwg.mxu0
    %v119 = vtanh.pop %v113
    %v120 = vtanh.pop %v116
    %v121 = vpack.c.bf16 %v120, %v119
    %v123 = vunpack.c.l.b16 %v121
    %v124 = vunpack.c.h.b16 %v121
    %v125 = vpack.c.b16 %v123, %v123
    %v126 = vpack.c.b16 %v124, %v124
    %vm129 = vcmask 257024
    %130 = vst.msk [vmem:[#allocation7] sm:$0xf] %vm129, %v125
    %131 = vst.msk [vmem:[#allocation7 + $0x4] sm:$0xf] %vm129, %v126
    // Predicated region
    $region22: #{tpu_custom_call.1} parent=1 // pred_check
      _
    $region23: #{tpu_custom_call.1} parent=1 // pred_check_branch
      %133 = sbr.rel (0) target = $region25
    $region24: #{tpu_custom_call.1} parent=1 // pred_region
      %s135 = ssub.s32 128, 128
      %136 = vsyncadd [#allocation4], %s135
      %s137 = sshll.u32 [#allocation7], 4
      %s138 = int_to_ptr.vmem [resolvable:$true] %s137
      %143 = dma.vmem_to_hbm [thread:$0]  %s138, 128, %s3, [#allocation4], 64, 64, 4
    $region25: #{tpu_custom_call.1} parent=1 // pred_fallthru
      _
    // Predicated region
    $region26: #{tpu_custom_call.1} parent=1 // pred_check
      _
    $region27: #{tpu_custom_call.1} parent=1 // pred_check_branch
      %145 = sbr.rel (0) target = $region29
    $region28: #{tpu_custom_call.1} parent=1 // pred_region
      %146 = dma.done [#allocation4], 128
    $region29: #{tpu_custom_call.1} parent=1 // pred_fallthru
      _
    %147 = vsyncpa [#allocation3], 1
    %148 = vsyncpa [#allocation6], 1
    %149 = vsyncpa [#allocation4], 1

</llo_original>
